<compile_context>
chip_gen: v5e
topology: v5e:2x2
jax: 0.10.0
libtpu: 0.0.40
codegen_flags: <defaults>
</compile_context>

<pallas_src>
import functools

import jax
import jax.numpy as jnp
from jax.experimental import pallas as pl
from jax.experimental.pallas import tpu as pltpu


def _linear_clamp_kernel(x_ref, w_ref, o_ref, *, min_value, max_value):
    # x_ref: (B, IN+1) bf16  (constant-1 column appended -> bias folded in)
    # w_ref: (IN+1, OUT_PAD) bf16  (bias in last row, zero-padded to 128 lanes)
    # o_ref: (B, OUT_PAD) f32
    y = jnp.dot(x_ref[...], w_ref[...], preferred_element_type=jnp.float32)
    # clamp_min then clamp_max == jnp.clip (matches torch even when min > max).
    o_ref[...] = jnp.clip(y, min_value, max_value)


@functools.partial(
    jax.jit, static_argnames=("out_features", "min_value", "max_value")
)
def linear_clamp(x, w_aug, *, out_features, min_value, max_value):
    """x: (B, IN) f32, w_aug: (IN+1, OUT_PAD) bf16 -> (B, out_features) f32.

    Computes clamp(x @ W.T + b, min_value, max_value) with W/b packed into
    w_aug at init time.
    """
    B, in_features = x.shape
    K, out_pad = w_aug.shape
    assert K == in_features + 1

    # Fold the bias add into the matmul: append a constant-1 column and feed
    # the MXU bf16 (single pass; K=33 is padded by the MXU anyway).
    ones = jnp.ones((B, 1), dtype=x.dtype)
    x_aug = jnp.concatenate([x, ones], axis=1).astype(jnp.bfloat16)

    kernel = functools.partial(
        _linear_clamp_kernel, min_value=min_value, max_value=max_value
    )
    cost = pl.CostEstimate(
        flops=2 * B * K * out_pad,
        bytes_accessed=(B * K + K * out_pad) * 2 + B * out_pad * 4,
        transcendentals=0,
    )
    vmem = pltpu.MemorySpace.VMEM
    out_padded = pl.pallas_call(
        kernel,
        out_shape=jax.ShapeDtypeStruct((B, out_pad), jnp.float32),
        in_specs=[
            pl.BlockSpec(memory_space=vmem),   # x_aug, whole array in VMEM
            pl.BlockSpec(memory_space=vmem),   # w_aug, whole array in VMEM
        ],
        out_specs=pl.BlockSpec(memory_space=vmem),
        cost_estimate=cost,
    )(x_aug, w_aug)
    # Lane-dense (B, 128) store inside the kernel; slice back to the real OUT.
    return out_padded[:, :out_features]


if __name__ == "__main__":
    IN_FEATURES = 32
    OUT_FEATURES = 64
    OUT_PAD = 128     # lane-dense output block (multiple of 128)
    BATCH = 8         # fill the sublane dim; amortizes fixed per-call cost

    # Module constructor args (min_value, max_value) -- chosen deterministically.
    MIN_VALUE = -0.5
    MAX_VALUE = 0.5

    key = jax.random.PRNGKey(0)
    kx, kw, kb = jax.random.split(key, 3)

    # Input x1 ~ torch.randn(B, 32)
    x1 = jax.random.normal(kx, (BATCH, IN_FEATURES), dtype=jnp.float32)

    # Deterministic nn.Linear(32, 64)-style init: U(-1/sqrt(in), 1/sqrt(in)).
    bound = 1.0 / jnp.sqrt(jnp.float32(IN_FEATURES))
    w = jax.random.uniform(
        kw, (OUT_FEATURES, IN_FEATURES), minval=-bound, maxval=bound,
        dtype=jnp.float32,
    )
    b = jax.random.uniform(
        kb, (OUT_FEATURES,), minval=-bound, maxval=bound, dtype=jnp.float32
    )

    # Init-time (hoisted) packing: transpose weight, fold bias into the last
    # row, zero-pad the OUT dim to 128 lanes, cast to bf16 once.
    w_aug = jnp.zeros((IN_FEATURES + 1, OUT_PAD), dtype=jnp.float32)
    w_aug = w_aug.at[:IN_FEATURES, :OUT_FEATURES].set(w.T)
    w_aug = w_aug.at[IN_FEATURES, :OUT_FEATURES].set(b)
    w_aug = w_aug.astype(jnp.bfloat16)

    out = linear_clamp(
        x1, w_aug,
        out_features=OUT_FEATURES, min_value=MIN_VALUE, max_value=MAX_VALUE,
    )
    out = jax.block_until_ready(out)

    # Reference check in plain JAX (f32). Kernel uses bf16 MXU inputs with f32
    # accumulation, so use a bf16-appropriate tolerance.
    ref = jnp.clip(x1 @ w.T + b, MIN_VALUE, MAX_VALUE)
    assert out.shape == (BATCH, OUT_FEATURES)
    assert jnp.allclose(out, ref, atol=2e-2, rtol=2e-2), float(
        jnp.max(jnp.abs(out - ref))
    )

    print("KERNEL_OK")
</pallas_src>

<mosaic_0001>
module attributes {stable_mosaic.version = 11 : i64} {
  func.func @_linear_clamp_kernel(%arg0: memref<8x33xbf16, #tpu.memory_space<vmem>>, %arg1: memref<33x128xbf16, #tpu.memory_space<vmem>>, %arg2: memref<8x128xf32, #tpu.memory_space<vmem>>) attributes {dimension_semantics = [], scalar_prefetch = 0 : i64, scratch_operands = 0 : i64, tpu.core_type = #tpu.core_type<tc>} {
    %c0 = arith.constant 0 : index
    %c0_0 = arith.constant 0 : index
    %0 = vector.load %arg0[%c0, %c0_0] : memref<8x33xbf16, #tpu.memory_space<vmem>>, vector<8x33xbf16>
    %c0_1 = arith.constant 0 : index
    %c0_2 = arith.constant 0 : index
    %1 = vector.load %arg1[%c0_1, %c0_2] : memref<33x128xbf16, #tpu.memory_space<vmem>>, vector<33x128xbf16>
    %cst = arith.constant dense<0.000000e+00> : vector<8x128xf32>
    %2 = tpu.matmul %0, %1, %cst {dimension_numbers = #tpu.dot_dimension_numbers<[1], [0], [0], [1], [0, 0, 1, 1], [], []>} : vector<8x33xbf16>, vector<33x128xbf16>, vector<8x128xf32> -> vector<8x128xf32>
    %cst_3 = arith.constant -5.000000e-01 : f32
    %cst_4 = arith.constant 5.000000e-01 : f32
    %3 = vector.broadcast %cst_3 : f32 to vector<8x128xf32>
    %4 = arith.maximumf %3, %2 : vector<8x128xf32>
    %5 = vector.broadcast %cst_4 : f32 to vector<8x128xf32>
    %6 = arith.minimumf %5, %4 : vector<8x128xf32>
    %c0_5 = arith.constant 0 : index
    %c0_6 = arith.constant 0 : index
    %7 = vector.load %arg2[%c0_5, %c0_6] : memref<8x128xf32, #tpu.memory_space<vmem>>, vector<8x128xf32>
    tpu.vector_store %arg2[%c0_5, %c0_6], %6 {strides = array<i32>} : memref<8x128xf32, #tpu.memory_space<vmem>>, vector<8x128xf32>,
    return
  }
}

</mosaic_0001>

<llo_original>
// kernel: linear_clamp.1
$region0: #{linear_clamp.1}
  #allocation0 [shape = 'u32[]', space=smem, size = 0x4, offset = 0x4, fixed_abs, tag = 'smem constant byte address 0x4 - core index']
  #allocation1 [shape = 'u32[72,128]{1,0:T(1,128)}', space=vmem, size = 0x9000, scoped, tag = 'internal scratch']
  %s0 = inlined_call_operand.vmem [shape: bf16[8,33], index: 0, kind: input, shape index: {}]
  %s1 = inlined_call_operand.vmem [shape: bf16[33,128], index: 1, kind: input, shape index: {}]
  %s2 = inlined_call_operand.hbm [shape: f32[8,128], index: 2, kind: output, shape index: {}]
  %s3 = sld [smem:[#allocation0]]
  $region18: #{linear_clamp.1} parent=0
    _
  %s5 = ssub.s32 1, %s3
  %s6 = scalar_select 0, %s5, %s3
  $region1: #{linear_clamp.1} parent=0
    #allocation2 [shape = 'u8[4096]{0}', space=vmem, size = 0x1000, scoped, tag = 'output window, operand 0, single buffered']
    #allocation3 [shape = 's32[1]{0}', space=sflag, size = 0x4, scoped, tag = 'scoped memory for linear_clamp.1']
    %7 = vsyncpa [#allocation3], 0
    // Predicated region
    $region2: #{linear_clamp.1} parent=1 // pred_check
      _
    $region3: #{linear_clamp.1} parent=1 // pred_check_branch
      %9 = sbr.rel (0) target = $region5
    $region4: #{linear_clamp.1} parent=1 // pred_region
      _
    $region5: #{linear_clamp.1} parent=1 // pred_fallthru
      _
    // Predicated region
    $region6: #{linear_clamp.1} parent=1 // pred_check
      _
    $region7: #{linear_clamp.1} parent=1 // pred_check_branch
      %11 = sbr.rel (0) target = $region9
    $region8: #{linear_clamp.1} parent=1 // pred_region
      _
    $region9: #{linear_clamp.1} parent=1 // pred_fallthru
      _
    %v13 = vld [vmem:[%s0] sm:$0xf]
    %v14 = vld [vmem:[%s1] sm:$0xf]
    %v15 = vld [vmem:[%s1 + $0x4] sm:$0xf]
    %v16 = vld [vmem:[%s1 + $0x8] sm:$0xf]
    %v17 = vld [vmem:[%s1 + $0xc] sm:$0xf]
    %v18 = vld [vmem:[%s1 + $0x10] sm:$0x1]
    %v24 = vunpack.c.l.b16 %v14
    %v25 = vunpack.c.l.b16 %v15
    %v26 = vunpack.c.l.b16 %v16
    %v27 = vunpack.c.l.b16 %v17
    %v28 = vunpack.c.l.b16 %v18
    %v29 = vpack.c.b16 %v25, %v24
    %v30 = vpack.c.b16 %v27, %v26
    %v31 = vpack.c.b16 %v28, %v28
    %vm34 = vcmask 269312
    %v36 = vsel %vm34, %v13, 0
    %vm38 = vcmask 1040384
    %v39 = vsel 0, 4294967295, 65535
    %v40 = vsel %vm38, %v39, 0
    %v42 = vand.u32 %v31, %v40
    %44 = vmatpush.bf16.msra.mxu0 0
    %45 = vmatpush.bf16.msra.mxu0 0
    %46 = vmatpush.bf16.msra.mxu0 0
    %47 = vmatpush.bf16.msra.mxu0 0
    %48 = vmatpush.bf16.msra.mxu0 0
    %49 = vmatpush.bf16.msra.mxu0 %v42
    %50 = vmatpush.bf16.msra.mxu0 %v30
    %51 = vmatpush.bf16.msra.mxu0 %v29
    %52 = vmatmul.bf16.gmra.mxu0 %v36
    %v53 = vpop.f32.mrf.mxu0
    %v54 = vadd.f32 0.0, %v53
    %v55 = vpop.f32.mrf.mxu0
    %56 = vdwg.mxu0
    %v57 = vmax.f32 %v54, -0.5
    %v58 = vmin.f32 %v57, 0.5
    %59 = vst [vmem:[#allocation2] sm:$0xff] %v58
    // Predicated region
    $region10: #{linear_clamp.1} parent=1 // pred_check
      _
    $region11: #{linear_clamp.1} parent=1 // pred_check_branch
      %61 = sbr.rel (0) target = $region13
    $region12: #{linear_clamp.1} parent=1 // pred_region
      %63 = vsyncadd [#allocation3], 0
      %s65 = sshll.u32 [#allocation2], 4
      %s66 = int_to_ptr.vmem [resolvable:$true] %s65
      %s67 = sshll.u32 %s2, 4
      %s68 = int_to_ptr.hbm [resolvable:$true] %s67
      %70 = dma.vmem_to_hbm [thread:$0]  %s66, 128, %s68, [#allocation3]
    $region13: #{linear_clamp.1} parent=1 // pred_fallthru
      _
    // Predicated region
    $region14: #{linear_clamp.1} parent=1 // pred_check
      _
    $region15: #{linear_clamp.1} parent=1 // pred_check_branch
      %72 = sbr.rel (0) target = $region17
    $region16: #{linear_clamp.1} parent=1 // pred_region
      %74 = dma.done [#allocation3], 128
    $region17: #{linear_clamp.1} parent=1 // pred_fallthru
      _
    %75 = vsyncpa [#allocation3], 1

</llo_original>
